<compile_context>
chip_gen: v7x
topology: tpu7x:2x2x1
jax: 0.10.0
libtpu: 0.0.40
codegen_flags: <defaults>
</compile_context>

<pallas_src>
import jax
import jax.numpy as jnp
from jax.experimental import pallas as pl
from jax.experimental.pallas import tpu as pltpu

# ----------------------------- model dims -----------------------------------
B, C_IN, H, W = 2, 4, 16, 16          # input (NCHW, like PyTorch)
KH, KW = 3, 3                          # Conv2d(C_IN, NUM_FEATURES, 3, padding=1)
NUM_FEATURES = 32                      # cnn.num_features
NUM_CLASSES = 2

HW = H * W
BHW = B * H * W                        # 512 im2col rows
K_REAL = KH * KW * C_IN                # 36 real contraction depth
K_PAD = 128                            # contraction depth padded to a lane tile
NF_PAD = 128                           # feature dim padded to a lane tile
NC_PAD = 128                           # class dim padded to a lane tile
B_PAD = 8                              # batch rows padded to a sublane tile
BIAS_COL = K_REAL                      # constant-1 patch column (conv-bias fold)
ONE_FEAT = NUM_FEATURES                # constant-1 feature column (head-bias fold)


# ------------------------------ fused kernel ---------------------------------
def fused_kernel(patches_ref, w_ref, pool_ref, out_ref):
    """conv3x3(+bias) + ReLU -> global-avg-pool -> linear head, all in VMEM.

    patches: (BHW, K_PAD)    bf16 lane-dense im2col rows (col K_REAL == 1.0)
    w:       (256, 128)      bf16 slab: rows [0,128) conv weights (+bias row),
                             rows [128,256) head weights (+bias row)
    pool:    (B_PAD, BHW)    f32 block-diagonal averaging matrix (entries 1/HW)
    out:     (B_PAD, NC_PAD) f32 lane-dense logits slab
    """
    w_conv = w_ref[pl.ds(0, K_PAD), :]          # (128, 128) bf16
    w_head = w_ref[pl.ds(K_PAD, NF_PAD), :]     # (128, 128) bf16

    # Single lane-dense MXU matmul; conv bias rides on the constant-1 patch
    # column, ReLU fused on the f32 result (no VMEM accumulator round-trips).
    feat = jnp.maximum(
        jnp.dot(patches_ref[...], w_conv, preferred_element_type=jnp.float32),
        0.0)                                     # (BHW, 128) f32

    # Global average pool as an MXU matmul with the precomputed pool matrix
    # (padded batch rows of pool are all-zero -> padded outputs stay zero).
    pooled = jnp.dot(pool_ref[...], feat, preferred_element_type=jnp.float32)

    # Linear head; its bias rides on the constant feature column (== 1.0 after
    # pooling).  Single full-tile lane-dense store.
    out_ref[...] = jnp.dot(pooled.astype(jnp.bfloat16), w_head,
                           preferred_element_type=jnp.float32)


# ------------------------------ param prep -----------------------------------
def prepare_params(conv_w, conv_b, lin_w, lin_b):
    """Pack the frozen conv + head weights into ONE bf16 (256,128) slab and
    precompute the static pooling matrix.  Done once, outside the hot path."""
    cw = jnp.zeros((K_PAD, NF_PAD), jnp.float32)
    cw = cw.at[:K_REAL, :NUM_FEATURES].set(conv_w)
    cw = cw.at[BIAS_COL, :NUM_FEATURES].set(conv_b)   # conv bias row
    cw = cw.at[BIAS_COL, ONE_FEAT].set(1.0)           # constant feature == 1.0

    lw = jnp.zeros((NF_PAD, NC_PAD), jnp.float32)
    lw = lw.at[:NUM_FEATURES, :NUM_CLASSES].set(lin_w)
    lw = lw.at[ONE_FEAT, :NUM_CLASSES].set(lin_b)     # head bias row

    w_slab = jnp.concatenate([cw, lw], axis=0).astype(jnp.bfloat16)  # (256,128)

    r = jax.lax.broadcasted_iota(jnp.int32, (B_PAD, BHW), 0)
    c = jax.lax.broadcasted_iota(jnp.int32, (B_PAD, BHW), 1)
    pool = jnp.where(r == c // HW, 1.0 / HW, 0.0).astype(jnp.float32)  # (8,512)
    return w_slab, pool


# ------------------------------ wrapper --------------------------------------
def build_patches(x_nchw):
    """NCHW -> lane-dense bf16 (BHW, K_PAD) im2col rows with a constant-1
    column at index K_REAL (conv-bias fold).  Fused by XLA ahead of the call."""
    x_nhwc = jnp.transpose(x_nchw, (0, 2, 3, 1))
    xp = jnp.pad(x_nhwc, ((0, 0), (1, 1), (1, 1), (0, 0)))       # 'same' padding
    wins = [xp[:, i:i + H, j:j + W, :] for i in range(KH) for j in range(KW)]
    patches = jnp.stack(wins, axis=3).reshape(BHW, K_REAL)       # (512, 36)
    ones = jnp.ones((BHW, 1), jnp.float32)
    zeros = jnp.zeros((BHW, K_PAD - K_REAL - 1), jnp.float32)
    return jnp.concatenate([patches, ones, zeros], axis=1).astype(jnp.bfloat16)


def cnn_fixed_predictor(x_nchw, w_slab, pool):
    """Forward pass. x_nchw: (B, C_IN, H, W) f32 -> (B, NUM_CLASSES) f32."""
    patches = build_patches(x_nchw)
    vmem = pl.BlockSpec(memory_space=pltpu.MemorySpace.VMEM)
    # TODO(synk): at larger B/H/W, tile the BHW axis with a ("parallel",) grid
    # (2 TCs on v7x) and re-derive tile sizes against v7x's 64 MiB VMEM / the
    # 32 MiB scoped default; at this toy size a single invocation is best.
    logits_pad = pl.pallas_call(
        fused_kernel,
        out_shape=jax.ShapeDtypeStruct((B_PAD, NC_PAD), jnp.float32),
        in_specs=[vmem, vmem, vmem],
        out_specs=vmem,
    )(patches, w_slab, pool)
    return logits_pad[:B, :NUM_CLASSES]


# ------------------------------ reference ------------------------------------
def reference(x_nchw, conv_w, conv_b, lin_w, lin_b):
    x_nhwc = jnp.transpose(x_nchw, (0, 2, 3, 1))
    xp = jnp.pad(x_nhwc, ((0, 0), (1, 1), (1, 1), (0, 0)))
    cols = []
    for i in range(KH):
        for j in range(KW):
            cols.append(xp[:, i:i + H, j:j + W, :])              # (B, H, W, C)
    patches = jnp.stack(cols, axis=3).reshape(B * H * W, KH * KW * C_IN)
    feat = jnp.maximum(patches @ conv_w + conv_b, 0.0)
    feat = feat.reshape(B, H * W, NUM_FEATURES).mean(axis=1)
    return feat @ lin_w + lin_b


# -------------------------------- main ----------------------------------------
if __name__ == "__main__":
    key = jax.random.PRNGKey(0)
    kx, kcw, kcb, klw, klb = jax.random.split(key, 5)

    x = jax.random.normal(kx, (B, C_IN, H, W), dtype=jnp.float32)

    # Conv2d(C_IN, NUM_FEATURES, 3, padding=1) weights laid out as
    # (KH*KW*C_IN, NUM_FEATURES) in (kh, kw, cin) row order.
    conv_w = jax.random.normal(kcw, (KH * KW * C_IN, NUM_FEATURES), jnp.float32) * 0.1
    conv_b = jax.random.normal(kcb, (NUM_FEATURES,), jnp.float32) * 0.1

    # Linear(NUM_FEATURES, NUM_CLASSES), stored transposed (in, out).
    lin_w = jax.random.normal(klw, (NUM_FEATURES, NUM_CLASSES), jnp.float32) * 0.1
    lin_b = jax.random.normal(klb, (NUM_CLASSES,), jnp.float32) * 0.1

    # Frozen params packed/padded once, outside the jit'ed hot path.
    w_slab, pool = prepare_params(conv_w, conv_b, lin_w, lin_b)

    out = jax.jit(cnn_fixed_predictor)(x, w_slab, pool)
    out = jax.block_until_ready(out)

    ref = reference(x, conv_w, conv_b, lin_w, lin_b)
    assert out.shape == (B, NUM_CLASSES)
    # bf16 patches/weights on the MXU (f32 accumulation) -> loosened tolerance.
    assert jnp.allclose(out, ref, atol=2e-2, rtol=2e-2), (out, ref)

    print("KERNEL_OK")
</pallas_src>

<mosaic_0001>
module attributes {stable_mosaic.version = 11 : i64} {
  func.func @fused_kernel(%arg0: memref<512x128xbf16, #tpu.memory_space<vmem>>, %arg1: memref<256x128xbf16, #tpu.memory_space<vmem>>, %arg2: memref<8x512xf32, #tpu.memory_space<vmem>>, %arg3: memref<8x128xf32, #tpu.memory_space<vmem>>) attributes {dimension_semantics = [], scalar_prefetch = 0 : i64, scratch_operands = 0 : i64, tpu.core_type = #tpu.core_type<tc>} {
    %c0 = arith.constant 0 : index
    %c0_0 = arith.constant 0 : index
    %0 = vector.load %arg1[%c0, %c0_0] : memref<256x128xbf16, #tpu.memory_space<vmem>>, vector<128x128xbf16>
    %c128 = arith.constant 128 : index
    %c0_1 = arith.constant 0 : index
    %1 = vector.load %arg1[%c128, %c0_1] : memref<256x128xbf16, #tpu.memory_space<vmem>>, vector<128x128xbf16>
    %c0_2 = arith.constant 0 : index
    %c0_3 = arith.constant 0 : index
    %2 = vector.load %arg0[%c0_2, %c0_3] : memref<512x128xbf16, #tpu.memory_space<vmem>>, vector<512x128xbf16>
    %cst = arith.constant dense<0.000000e+00> : vector<512x128xf32>
    %3 = tpu.matmul %2, %0, %cst {dimension_numbers = #tpu.dot_dimension_numbers<[1], [0], [0], [1], [0, 0, 1, 1], [], []>} : vector<512x128xbf16>, vector<128x128xbf16>, vector<512x128xf32> -> vector<512x128xf32>
    %cst_4 = arith.constant 0.000000e+00 : f32
    %4 = vector.broadcast %cst_4 : f32 to vector<512x128xf32>
    %5 = arith.maximumf %3, %4 : vector<512x128xf32>
    %c0_5 = arith.constant 0 : index
    %c0_6 = arith.constant 0 : index
    %6 = vector.load %arg2[%c0_5, %c0_6] : memref<8x512xf32, #tpu.memory_space<vmem>>, vector<8x512xf32>
    %cst_7 = arith.constant dense<0.000000e+00> : vector<8x128xf32>
    %7 = tpu.matmul %6, %5, %cst_7 {dimension_numbers = #tpu.dot_dimension_numbers<[1], [0], [0], [1], [0, 0, 1, 1], [], []>} : vector<8x512xf32>, vector<512x128xf32>, vector<8x128xf32> -> vector<8x128xf32>
    %8 = arith.truncf %7 : vector<8x128xf32> to vector<8x128xbf16>
    %cst_8 = arith.constant dense<0.000000e+00> : vector<8x128xf32>
    %9 = tpu.matmul %8, %1, %cst_8 {dimension_numbers = #tpu.dot_dimension_numbers<[1], [0], [0], [1], [0, 0, 1, 1], [], []>} : vector<8x128xbf16>, vector<128x128xbf16>, vector<8x128xf32> -> vector<8x128xf32>
    %c0_9 = arith.constant 0 : index
    %c0_10 = arith.constant 0 : index
    %10 = vector.load %arg3[%c0_9, %c0_10] : memref<8x128xf32, #tpu.memory_space<vmem>>, vector<8x128xf32>
    tpu.vector_store %arg3[%c0_9, %c0_10], %9 {strides = array<i32>} : memref<8x128xf32, #tpu.memory_space<vmem>>, vector<8x128xf32>,
    return
  }
}

</mosaic_0001>

<llo_original>
// kernel: cnn_fixed_predictor.1
$region0: #{cnn_fixed_predictor.1}
  #allocation0 [shape = 'u32[]', space=smem, size = 0x4, offset = 0x4, fixed_abs, tag = 'smem constant byte address 0x4 - core index']
  #allocation1 [shape = 'u32[144,128]{1,0:T(1,128)}', space=vmem, size = 0x12000, scoped, tag = 'internal scratch']
  %s0 = inlined_call_operand.vmem [shape: bf16[512,128], index: 0, kind: input, shape index: {}]
  %s1 = inlined_call_operand.vmem [shape: bf16[256,128], index: 1, kind: input, shape index: {}]
  %s2 = inlined_call_operand.vmem [shape: f32[8,512], index: 2, kind: input, shape index: {}]
  %s3 = inlined_call_operand.vmem [shape: f32[8,128], index: 3, kind: output, shape index: {}]
  %s4 = sld [smem:[#allocation0]]
  $region22: #{cnn_fixed_predictor.1} parent=0
    _
  %s6 = ssub.s32 1, %s4
  %s7 = scalar_select 0, %s6, %s4
  // Predicated region
  $region2: #{cnn_fixed_predictor.1} parent=0 // pred_check
    _
  $region3: #{cnn_fixed_predictor.1} parent=0 // pred_check_branch
    %9 = sbr.rel (0) target = $region5
  $region4: #{cnn_fixed_predictor.1} parent=0 // pred_region
    _
  $region5: #{cnn_fixed_predictor.1} parent=0 // pred_fallthru
    _
  // Predicated region
  $region6: #{cnn_fixed_predictor.1} parent=0 // pred_check
    _
  $region7: #{cnn_fixed_predictor.1} parent=0 // pred_check_branch
    %11 = sbr.rel (0) target = $region9
  $region8: #{cnn_fixed_predictor.1} parent=0 // pred_region
    _
  $region9: #{cnn_fixed_predictor.1} parent=0 // pred_fallthru
    _
  // Predicated region
  $region10: #{cnn_fixed_predictor.1} parent=0 // pred_check
    _
  $region11: #{cnn_fixed_predictor.1} parent=0 // pred_check_branch
    %13 = sbr.rel (0) target = $region13
  $region12: #{cnn_fixed_predictor.1} parent=0 // pred_region
    _
  $region13: #{cnn_fixed_predictor.1} parent=0 // pred_fallthru
    _
  %v15 = vld [vmem:[%s1] sm:$0xf]
  %v16 = vld [vmem:[%s1 + $0x4] sm:$0xf]
  %v17 = vld [vmem:[%s1 + $0x8] sm:$0xf]
  %v18 = vld [vmem:[%s1 + $0xc] sm:$0xf]
  %v19 = vld [vmem:[%s1 + $0x10] sm:$0xf]
  %v20 = vld [vmem:[%s1 + $0x14] sm:$0xf]
  %v21 = vld [vmem:[%s1 + $0x18] sm:$0xf]
  %v22 = vld [vmem:[%s1 + $0x1c] sm:$0xf]
  %v23 = vld [vmem:[%s1 + $0x20] sm:$0xf]
  %v24 = vld [vmem:[%s1 + $0x24] sm:$0xf]
  %v25 = vld [vmem:[%s1 + $0x28] sm:$0xf]
  %v26 = vld [vmem:[%s1 + $0x2c] sm:$0xf]
  %v27 = vld [vmem:[%s1 + $0x30] sm:$0xf]
  %v28 = vld [vmem:[%s1 + $0x34] sm:$0xf]
  %v29 = vld [vmem:[%s1 + $0x38] sm:$0xf]
  %v30 = vld [vmem:[%s1 + $0x3c] sm:$0xf]
  %v31 = vld [vmem:[%s1 + $0x40] sm:$0xf]
  %v32 = vld [vmem:[%s1 + $0x44] sm:$0xf]
  %v33 = vld [vmem:[%s1 + $0x48] sm:$0xf]
  %v34 = vld [vmem:[%s1 + $0x4c] sm:$0xf]
  %v35 = vld [vmem:[%s1 + $0x50] sm:$0xf]
  %v36 = vld [vmem:[%s1 + $0x54] sm:$0xf]
  %v37 = vld [vmem:[%s1 + $0x58] sm:$0xf]
  %v38 = vld [vmem:[%s1 + $0x5c] sm:$0xf]
  %v39 = vld [vmem:[%s1 + $0x60] sm:$0xf]
  %v40 = vld [vmem:[%s1 + $0x64] sm:$0xf]
  %v41 = vld [vmem:[%s1 + $0x68] sm:$0xf]
  %v42 = vld [vmem:[%s1 + $0x6c] sm:$0xf]
  %v43 = vld [vmem:[%s1 + $0x70] sm:$0xf]
  %v44 = vld [vmem:[%s1 + $0x74] sm:$0xf]
  %v45 = vld [vmem:[%s1 + $0x78] sm:$0xf]
  %v46 = vld [vmem:[%s1 + $0x7c] sm:$0xf]
  %v47 = vld [vmem:[%s0] sm:$0xf]
  %v48 = vld [vmem:[%s0 + $0x4] sm:$0xf]
  %v49 = vld [vmem:[%s0 + $0x8] sm:$0xf]
  %v50 = vld [vmem:[%s0 + $0xc] sm:$0xf]
  %v51 = vld [vmem:[%s0 + $0x10] sm:$0xf]
  %v52 = vld [vmem:[%s0 + $0x14] sm:$0xf]
  %v53 = vld [vmem:[%s0 + $0x18] sm:$0xf]
  %v54 = vld [vmem:[%s0 + $0x1c] sm:$0xf]
  %v55 = vld [vmem:[%s0 + $0x20] sm:$0xf]
  %v56 = vld [vmem:[%s0 + $0x24] sm:$0xf]
  %v57 = vld [vmem:[%s0 + $0x28] sm:$0xf]
  %v58 = vld [vmem:[%s0 + $0x2c] sm:$0xf]
  %v59 = vld [vmem:[%s0 + $0x30] sm:$0xf]
  %v60 = vld [vmem:[%s0 + $0x34] sm:$0xf]
  %v61 = vld [vmem:[%s0 + $0x38] sm:$0xf]
  %v62 = vld [vmem:[%s0 + $0x3c] sm:$0xf]
  %v63 = vld [vmem:[%s0 + $0x40] sm:$0xf]
  %v64 = vld [vmem:[%s0 + $0x44] sm:$0xf]
  %v65 = vld [vmem:[%s0 + $0x48] sm:$0xf]
  %v66 = vld [vmem:[%s0 + $0x4c] sm:$0xf]
  %v67 = vld [vmem:[%s0 + $0x50] sm:$0xf]
  %v68 = vld [vmem:[%s0 + $0x54] sm:$0xf]
  %v69 = vld [vmem:[%s0 + $0x58] sm:$0xf]
  %v70 = vld [vmem:[%s0 + $0x5c] sm:$0xf]
  %v71 = vld [vmem:[%s0 + $0x60] sm:$0xf]
  %v72 = vld [vmem:[%s0 + $0x64] sm:$0xf]
  %v73 = vld [vmem:[%s0 + $0x68] sm:$0xf]
  %v74 = vld [vmem:[%s0 + $0x6c] sm:$0xf]
  %v75 = vld [vmem:[%s0 + $0x70] sm:$0xf]
  %v76 = vld [vmem:[%s0 + $0x74] sm:$0xf]
  %v77 = vld [vmem:[%s0 + $0x78] sm:$0xf]
  %v78 = vld [vmem:[%s0 + $0x7c] sm:$0xf]
  %v79 = vld [vmem:[%s0 + $0x80] sm:$0xf]
  %v80 = vld [vmem:[%s0 + $0x84] sm:$0xf]
  %v81 = vld [vmem:[%s0 + $0x88] sm:$0xf]
  %v82 = vld [vmem:[%s0 + $0x8c] sm:$0xf]
  %v83 = vld [vmem:[%s0 + $0x90] sm:$0xf]
  %v84 = vld [vmem:[%s0 + $0x94] sm:$0xf]
  %v85 = vld [vmem:[%s0 + $0x98] sm:$0xf]
  %v86 = vld [vmem:[%s0 + $0x9c] sm:$0xf]
  %v87 = vld [vmem:[%s0 + $0xa0] sm:$0xf]
  %v88 = vld [vmem:[%s0 + $0xa4] sm:$0xf]
  %v89 = vld [vmem:[%s0 + $0xa8] sm:$0xf]
  %v90 = vld [vmem:[%s0 + $0xac] sm:$0xf]
  %v91 = vld [vmem:[%s0 + $0xb0] sm:$0xf]
  %v92 = vld [vmem:[%s0 + $0xb4] sm:$0xf]
  %v93 = vld [vmem:[%s0 + $0xb8] sm:$0xf]
  %v94 = vld [vmem:[%s0 + $0xbc] sm:$0xf]
  %v95 = vld [vmem:[%s0 + $0xc0] sm:$0xf]
  %v96 = vld [vmem:[%s0 + $0xc4] sm:$0xf]
  %v97 = vld [vmem:[%s0 + $0xc8] sm:$0xf]
  %v98 = vld [vmem:[%s0 + $0xcc] sm:$0xf]
  %v99 = vld [vmem:[%s0 + $0xd0] sm:$0xf]
  %v100 = vld [vmem:[%s0 + $0xd4] sm:$0xf]
  %v101 = vld [vmem:[%s0 + $0xd8] sm:$0xf]
  %v102 = vld [vmem:[%s0 + $0xdc] sm:$0xf]
  %v103 = vld [vmem:[%s0 + $0xe0] sm:$0xf]
  %v104 = vld [vmem:[%s0 + $0xe4] sm:$0xf]
  %v105 = vld [vmem:[%s0 + $0xe8] sm:$0xf]
  %v106 = vld [vmem:[%s0 + $0xec] sm:$0xf]
  %v107 = vld [vmem:[%s0 + $0xf0] sm:$0xf]
  %v108 = vld [vmem:[%s0 + $0xf4] sm:$0xf]
  %v109 = vld [vmem:[%s0 + $0xf8] sm:$0xf]
  %v110 = vld [vmem:[%s0 + $0xfc] sm:$0xf]
  %v175 = vunpack.c.l.b16 %v47
  %v176 = vunpack.c.l.b16 %v48
  %v177 = vunpack.c.l.b16 %v49
  %v178 = vunpack.c.l.b16 %v50
  %v179 = vunpack.c.l.b16 %v51
  %v180 = vunpack.c.l.b16 %v52
  %v181 = vunpack.c.l.b16 %v53
  %v182 = vunpack.c.l.b16 %v54
  %v183 = vunpack.c.l.b16 %v55
  %v184 = vunpack.c.l.b16 %v56
  %v185 = vunpack.c.l.b16 %v57
  %v186 = vunpack.c.l.b16 %v58
  %v187 = vunpack.c.l.b16 %v59
  %v188 = vunpack.c.l.b16 %v60
  %v189 = vunpack.c.l.b16 %v61
  %v190 = vunpack.c.l.b16 %v62
  %v191 = vunpack.c.l.b16 %v63
  %v192 = vunpack.c.l.b16 %v64
  %v193 = vunpack.c.l.b16 %v65
  %v194 = vunpack.c.l.b16 %v66
  %v195 = vunpack.c.l.b16 %v67
  %v196 = vunpack.c.l.b16 %v68
  %v197 = vunpack.c.l.b16 %v69
  %v198 = vunpack.c.l.b16 %v70
  %v199 = vunpack.c.l.b16 %v71
  %v200 = vunpack.c.l.b16 %v72
  %v201 = vunpack.c.l.b16 %v73
  %v202 = vunpack.c.l.b16 %v74
  %v203 = vunpack.c.l.b16 %v75
  %v204 = vunpack.c.l.b16 %v76
  %v205 = vunpack.c.l.b16 %v77
  %v206 = vunpack.c.l.b16 %v78
  %v207 = vunpack.c.l.b16 %v79
  %v208 = vunpack.c.l.b16 %v80
  %v209 = vunpack.c.l.b16 %v81
  %v210 = vunpack.c.l.b16 %v82
  %v211 = vunpack.c.l.b16 %v83
  %v212 = vunpack.c.l.b16 %v84
  %v213 = vunpack.c.l.b16 %v85
  %v214 = vunpack.c.l.b16 %v86
  %v215 = vunpack.c.l.b16 %v87
  %v216 = vunpack.c.l.b16 %v88
  %v217 = vunpack.c.l.b16 %v89
  %v218 = vunpack.c.l.b16 %v90
  %v219 = vunpack.c.l.b16 %v91
  %v220 = vunpack.c.l.b16 %v92
  %v221 = vunpack.c.l.b16 %v93
  %v222 = vunpack.c.l.b16 %v94
  %v223 = vunpack.c.l.b16 %v95
  %v224 = vunpack.c.l.b16 %v96
  %v225 = vunpack.c.l.b16 %v97
  %v226 = vunpack.c.l.b16 %v98
  %v227 = vunpack.c.l.b16 %v99
  %v228 = vunpack.c.l.b16 %v100
  %v229 = vunpack.c.l.b16 %v101
  %v230 = vunpack.c.l.b16 %v102
  %v231 = vunpack.c.l.b16 %v103
  %v232 = vunpack.c.l.b16 %v104
  %v233 = vunpack.c.l.b16 %v105
  %v234 = vunpack.c.l.b16 %v106
  %v235 = vunpack.c.l.b16 %v107
  %v236 = vunpack.c.l.b16 %v108
  %v237 = vunpack.c.l.b16 %v109
  %v238 = vunpack.c.l.b16 %v110
  %v239 = vpack.c.b16 %v176, %v175
  %v240 = vpack.c.b16 %v178, %v177
  %v241 = vpack.c.b16 %v180, %v179
  %v242 = vpack.c.b16 %v182, %v181
  %v243 = vpack.c.b16 %v184, %v183
  %v244 = vpack.c.b16 %v186, %v185
  %v245 = vpack.c.b16 %v188, %v187
  %v246 = vpack.c.b16 %v190, %v189
  %v247 = vpack.c.b16 %v192, %v191
  %v248 = vpack.c.b16 %v194, %v193
  %v249 = vpack.c.b16 %v196, %v195
  %v250 = vpack.c.b16 %v198, %v197
  %v251 = vpack.c.b16 %v200, %v199
  %v252 = vpack.c.b16 %v202, %v201
  %v253 = vpack.c.b16 %v204, %v203
  %v254 = vpack.c.b16 %v206, %v205
  %v255 = vpack.c.b16 %v208, %v207
  %v256 = vpack.c.b16 %v210, %v209
  %v257 = vpack.c.b16 %v212, %v211
  %v258 = vpack.c.b16 %v214, %v213
  %v259 = vpack.c.b16 %v216, %v215
  %v260 = vpack.c.b16 %v218, %v217
  %v261 = vpack.c.b16 %v220, %v219
  %v262 = vpack.c.b16 %v222, %v221
  %v263 = vpack.c.b16 %v224, %v223
  %v264 = vpack.c.b16 %v226, %v225
  %v265 = vpack.c.b16 %v228, %v227
  %v266 = vpack.c.b16 %v230, %v229
  %v267 = vpack.c.b16 %v232, %v231
  %v268 = vpack.c.b16 %v234, %v233
  %v269 = vpack.c.b16 %v236, %v235
  %v270 = vpack.c.b16 %v238, %v237
  %v319 = vunpack.c.l.b16 %v15
  %v320 = vunpack.c.l.b16 %v16
  %v321 = vunpack.c.l.b16 %v17
  %v322 = vunpack.c.l.b16 %v18
  %v323 = vunpack.c.l.b16 %v19
  %v324 = vunpack.c.l.b16 %v20
  %v325 = vunpack.c.l.b16 %v21
  %v326 = vunpack.c.l.b16 %v22
  %v327 = vunpack.c.l.b16 %v23
  %v328 = vunpack.c.l.b16 %v24
  %v329 = vunpack.c.l.b16 %v25
  %v330 = vunpack.c.l.b16 %v26
  %v331 = vunpack.c.l.b16 %v27
  %v332 = vunpack.c.l.b16 %v28
  %v333 = vunpack.c.l.b16 %v29
  %v334 = vunpack.c.l.b16 %v30
  %v335 = vpack.c.b16 %v320, %v319
  %v336 = vpack.c.b16 %v322, %v321
  %v337 = vpack.c.b16 %v324, %v323
  %v338 = vpack.c.b16 %v326, %v325
  %v339 = vpack.c.b16 %v328, %v327
  %v340 = vpack.c.b16 %v330, %v329
  %v341 = vpack.c.b16 %v332, %v331
  %v342 = vpack.c.b16 %v334, %v333
  %351 = vmatprep.subr.bf16.mxu0 0
  %352 = vmatpush1.bf16.msra.mxu0 %v335
  %353 = vmatprep.subr.bf16.mxu0 0
  %354 = vmatpush1.bf16.msra.mxu0 %v336
  %355 = vmatprep.subr.bf16.mxu0 0
  %356 = vmatpush1.bf16.msra.mxu0 %v337
  %357 = vmatprep.subr.bf16.mxu0 0
  %358 = vmatpush1.bf16.msra.mxu0 %v338
  %359 = vmatprep.subr.bf16.mxu0 0
  %360 = vmatpush1.bf16.msra.mxu0 %v339
  %361 = vmatprep.subr.bf16.mxu0 0
  %362 = vmatpush1.bf16.msra.mxu0 %v340
  %363 = vmatprep.subr.bf16.mxu0 0
  %364 = vmatpush1.bf16.msra.mxu0 %v341
  %365 = vmatprep.subr.bf16.mxu0 0
  %366 = vmatpush1.bf16.msra.mxu0 %v342
  %367 = vmatprep.subr.bf16.mxu0 0
  %368 = vmatpush1.bf16.msra.mxu0 0
  %369 = vmatprep.subr.bf16.mxu0 0
  %370 = vmatpush1.bf16.msra.mxu0 0
  %371 = vmatprep.subr.bf16.mxu0 0
  %372 = vmatpush1.bf16.msra.mxu0 0
  %373 = vmatprep.subr.bf16.mxu0 0
  %374 = vmatpush1.bf16.msra.mxu0 0
  %375 = vmatprep.subr.bf16.mxu0 0
  %376 = vmatpush1.bf16.msra.mxu0 0
  %377 = vmatprep.subr.bf16.mxu0 0
  %378 = vmatpush1.bf16.msra.mxu0 0
  %379 = vmatprep.subr.bf16.mxu0 0
  %380 = vmatpush1.bf16.msra.mxu0 0
  %381 = vmatprep.subr.bf16.mxu0 0
  %382 = vmatpush1.bf16.msra.mxu0 0
  %383 = vmatprep.mubr.bf16.mxu0 0
  %384 = vmatmul.mubr.bf16.gmra.mrb[0].mxu0 %v239
  %v385 = vpop.f32.mrb[0].mxu0
  %v386 = vadd.f32 0.0, %v385
  %v387 = vpop.f32.mrb[0].mxu0
  %v388 = vpop.f32.mrb[0].mxu0
  %v389 = vadd.f32 0.0, %v388
  %v390 = vpop.f32.mrb[0].mxu0
  %391 = vmatprep.mubr.bf16.mxu0 0
  %392 = vmatmul.mubr.bf16.gmra.mrb[0].mxu0 %v240
  %v393 = vpop.f32.mrb[0].mxu0
  %v394 = vadd.f32 0.0, %v393
  %v395 = vpop.f32.mrb[0].mxu0
  %v396 = vpop.f32.mrb[0].mxu0
  %v397 = vadd.f32 0.0, %v396
  %v398 = vpop.f32.mrb[0].mxu0
  %399 = vmatprep.mubr.bf16.mxu0 0
  %400 = vmatmul.mubr.bf16.gmra.mrb[0].mxu0 %v241
  %v401 = vpop.f32.mrb[0].mxu0
  %v402 = vadd.f32 0.0, %v401
  %v403 = vpop.f32.mrb[0].mxu0
  %v404 = vpop.f32.mrb[0].mxu0
  %v405 = vadd.f32 0.0, %v404
  %v406 = vpop.f32.mrb[0].mxu0
  %407 = vmatprep.mubr.bf16.mxu0 0
  %408 = vmatmul.mubr.bf16.gmra.mrb[0].mxu0 %v242
  %v409 = vpop.f32.mrb[0].mxu0
  %v410 = vadd.f32 0.0, %v409
  %v411 = vpop.f32.mrb[0].mxu0
  %v412 = vpop.f32.mrb[0].mxu0
  %v413 = vadd.f32 0.0, %v412
  %v414 = vpop.f32.mrb[0].mxu0
  %415 = vmatprep.mubr.bf16.mxu0 0
  %416 = vmatmul.mubr.bf16.gmra.mrb[0].mxu0 %v243
  %v417 = vpop.f32.mrb[0].mxu0
  %v418 = vadd.f32 0.0, %v417
  %v419 = vpop.f32.mrb[0].mxu0
  %v420 = vpop.f32.mrb[0].mxu0
  %v421 = vadd.f32 0.0, %v420
  %v422 = vpop.f32.mrb[0].mxu0
  %423 = vmatprep.mubr.bf16.mxu0 0
  %424 = vmatmul.mubr.bf16.gmra.mrb[0].mxu0 %v244
  %v425 = vpop.f32.mrb[0].mxu0
  %v426 = vadd.f32 0.0, %v425
  %v427 = vpop.f32.mrb[0].mxu0
  %v428 = vpop.f32.mrb[0].mxu0
  %v429 = vadd.f32 0.0, %v428
  %v430 = vpop.f32.mrb[0].mxu0
  %431 = vmatprep.mubr.bf16.mxu0 0
  %432 = vmatmul.mubr.bf16.gmra.mrb[0].mxu0 %v245
  %v433 = vpop.f32.mrb[0].mxu0
  %v434 = vadd.f32 0.0, %v433
  %v435 = vpop.f32.mrb[0].mxu0
  %v436 = vpop.f32.mrb[0].mxu0
  %v437 = vadd.f32 0.0, %v436
  %v438 = vpop.f32.mrb[0].mxu0
  %439 = vmatprep.mubr.bf16.mxu0 0
  %440 = vmatmul.mubr.bf16.gmra.mrb[0].mxu0 %v246
  %v441 = vpop.f32.mrb[0].mxu0
  %v442 = vadd.f32 0.0, %v441
  %v443 = vpop.f32.mrb[0].mxu0
  %v444 = vpop.f32.mrb[0].mxu0
  %v445 = vadd.f32 0.0, %v444
  %v446 = vpop.f32.mrb[0].mxu0
  %447 = vmatprep.mubr.bf16.mxu0 0
  %448 = vmatmul.mubr.bf16.gmra.mrb[0].mxu0 %v247
  %v449 = vpop.f32.mrb[0].mxu0
  %v450 = vadd.f32 0.0, %v449
  %v451 = vpop.f32.mrb[0].mxu0
  %v452 = vpop.f32.mrb[0].mxu0
  %v453 = vadd.f32 0.0, %v452
  %v454 = vpop.f32.mrb[0].mxu0
  %455 = vmatprep.mubr.bf16.mxu0 0
  %456 = vmatmul.mubr.bf16.gmra.mrb[0].mxu0 %v248
  %v457 = vpop.f32.mrb[0].mxu0
  %v458 = vadd.f32 0.0, %v457
  %v459 = vpop.f32.mrb[0].mxu0
  %v460 = vpop.f32.mrb[0].mxu0
  %v461 = vadd.f32 0.0, %v460
  %v462 = vpop.f32.mrb[0].mxu0
  %463 = vmatprep.mubr.bf16.mxu0 0
  %464 = vmatmul.mubr.bf16.gmra.mrb[0].mxu0 %v249
  %v465 = vpop.f32.mrb[0].mxu0
  %v466 = vadd.f32 0.0, %v465
  %v467 = vpop.f32.mrb[0].mxu0
  %v468 = vpop.f32.mrb[0].mxu0
  %v469 = vadd.f32 0.0, %v468
  %v470 = vpop.f32.mrb[0].mxu0
  %471 = vmatprep.mubr.bf16.mxu0 0
  %472 = vmatmul.mubr.bf16.gmra.mrb[0].mxu0 %v250
  %v473 = vpop.f32.mrb[0].mxu0
  %v474 = vadd.f32 0.0, %v473
  %v475 = vpop.f32.mrb[0].mxu0
  %v476 = vpop.f32.mrb[0].mxu0
  %v477 = vadd.f32 0.0, %v476
  %v478 = vpop.f32.mrb[0].mxu0
  %479 = vmatprep.mubr.bf16.mxu0 0
  %480 = vmatmul.mubr.bf16.gmra.mrb[0].mxu0 %v251
  %v481 = vpop.f32.mrb[0].mxu0
  %v482 = vadd.f32 0.0, %v481
  %v483 = vpop.f32.mrb[0].mxu0
  %v484 = vpop.f32.mrb[0].mxu0
  %v485 = vadd.f32 0.0, %v484
  %v486 = vpop.f32.mrb[0].mxu0
  %487 = vmatprep.mubr.bf16.mxu0 0
  %488 = vmatmul.mubr.bf16.gmra.mrb[0].mxu0 %v252
  %v489 = vpop.f32.mrb[0].mxu0
  %v490 = vadd.f32 0.0, %v489
  %v491 = vpop.f32.mrb[0].mxu0
  %v492 = vpop.f32.mrb[0].mxu0
  %v493 = vadd.f32 0.0, %v492
  %v494 = vpop.f32.mrb[0].mxu0
  %495 = vmatprep.mubr.bf16.mxu0 0
  %496 = vmatmul.mubr.bf16.gmra.mrb[0].mxu0 %v253
  %v497 = vpop.f32.mrb[0].mxu0
  %v498 = vadd.f32 0.0, %v497
  %v499 = vpop.f32.mrb[0].mxu0
  %v500 = vpop.f32.mrb[0].mxu0
  %v501 = vadd.f32 0.0, %v500
  %v502 = vpop.f32.mrb[0].mxu0
  %503 = vmatprep.mubr.bf16.mxu0 0
  %504 = vmatmul.mubr.bf16.gmra.mrb[0].mxu0 %v254
  %v505 = vpop.f32.mrb[0].mxu0
  %v506 = vadd.f32 0.0, %v505
  %v507 = vpop.f32.mrb[0].mxu0
  %v508 = vpop.f32.mrb[0].mxu0
  %v509 = vadd.f32 0.0, %v508
  %v510 = vpop.f32.mrb[0].mxu0
  %511 = vmatprep.mubr.bf16.mxu0 0
  %512 = vmatmul.mubr.bf16.gmra.mrb[0].mxu0 %v255
  %v513 = vpop.f32.mrb[0].mxu0
  %v514 = vadd.f32 0.0, %v513
  %v515 = vpop.f32.mrb[0].mxu0
  %v516 = vpop.f32.mrb[0].mxu0
  %v517 = vadd.f32 0.0, %v516
  %v518 = vpop.f32.mrb[0].mxu0
  %519 = vmatprep.mubr.bf16.mxu0 0
  %520 = vmatmul.mubr.bf16.gmra.mrb[0].mxu0 %v256
  %v521 = vpop.f32.mrb[0].mxu0
  %v522 = vadd.f32 0.0, %v521
  %v523 = vpop.f32.mrb[0].mxu0
  %v524 = vpop.f32.mrb[0].mxu0
  %v525 = vadd.f32 0.0, %v524
  %v526 = vpop.f32.mrb[0].mxu0
  %527 = vmatprep.mubr.bf16.mxu0 0
  %528 = vmatmul.mubr.bf16.gmra.mrb[0].mxu0 %v257
  %v529 = vpop.f32.mrb[0].mxu0
  %v530 = vadd.f32 0.0, %v529
  %v531 = vpop.f32.mrb[0].mxu0
  %v532 = vpop.f32.mrb[0].mxu0
  %v533 = vadd.f32 0.0, %v532
  %v534 = vpop.f32.mrb[0].mxu0
  %535 = vmatprep.mubr.bf16.mxu0 0
  %536 = vmatmul.mubr.bf16.gmra.mrb[0].mxu0 %v258
  %v537 = vpop.f32.mrb[0].mxu0
  %v538 = vadd.f32 0.0, %v537
  %v539 = vpop.f32.mrb[0].mxu0
  %v540 = vpop.f32.mrb[0].mxu0
  %v541 = vadd.f32 0.0, %v540
  %v542 = vpop.f32.mrb[0].mxu0
  %543 = vmatprep.mubr.bf16.mxu0 0
  %544 = vmatmul.mubr.bf16.gmra.mrb[0].mxu0 %v259
  %v545 = vpop.f32.mrb[0].mxu0
  %v546 = vadd.f32 0.0, %v545
  %v547 = vpop.f32.mrb[0].mxu0
  %v548 = vpop.f32.mrb[0].mxu0
  %v549 = vadd.f32 0.0, %v548
  %v550 = vpop.f32.mrb[0].mxu0
  %551 = vmatprep.mubr.bf16.mxu0 0
  %552 = vmatmul.mubr.bf16.gmra.mrb[0].mxu0 %v260
  %v553 = vpop.f32.mrb[0].mxu0
  %v554 = vadd.f32 0.0, %v553
  %v555 = vpop.f32.mrb[0].mxu0
  %v556 = vpop.f32.mrb[0].mxu0
  %v557 = vadd.f32 0.0, %v556
  %v558 = vpop.f32.mrb[0].mxu0
  %559 = vmatprep.mubr.bf16.mxu0 0
  %560 = vmatmul.mubr.bf16.gmra.mrb[0].mxu0 %v261
  %v561 = vpop.f32.mrb[0].mxu0
  %v562 = vadd.f32 0.0, %v561
  %v563 = vpop.f32.mrb[0].mxu0
  %v564 = vpop.f32.mrb[0].mxu0
  %v565 = vadd.f32 0.0, %v564
  %v566 = vpop.f32.mrb[0].mxu0
  %567 = vmatprep.mubr.bf16.mxu0 0
  %568 = vmatmul.mubr.bf16.gmra.mrb[0].mxu0 %v262
  %v569 = vpop.f32.mrb[0].mxu0
  %v570 = vadd.f32 0.0, %v569
  %v571 = vpop.f32.mrb[0].mxu0
  %v572 = vpop.f32.mrb[0].mxu0
  %v573 = vadd.f32 0.0, %v572
  %v574 = vpop.f32.mrb[0].mxu0
  %575 = vmatprep.mubr.bf16.mxu0 0
  %576 = vmatmul.mubr.bf16.gmra.mrb[0].mxu0 %v263
  %v577 = vpop.f32.mrb[0].mxu0
  %v578 = vadd.f32 0.0, %v577
  %v579 = vpop.f32.mrb[0].mxu0
  %v580 = vpop.f32.mrb[0].mxu0
  %v581 = vadd.f32 0.0, %v580
  %v582 = vpop.f32.mrb[0].mxu0
  %583 = vmatprep.mubr.bf16.mxu0 0
  %584 = vmatmul.mubr.bf16.gmra.mrb[0].mxu0 %v264
  %v585 = vpop.f32.mrb[0].mxu0
  %v586 = vadd.f32 0.0, %v585
  %v587 = vpop.f32.mrb[0].mxu0
  %v588 = vpop.f32.mrb[0].mxu0
  %v589 = vadd.f32 0.0, %v588
  %v590 = vpop.f32.mrb[0].mxu0
  %591 = vmatprep.mubr.bf16.mxu0 0
  %592 = vmatmul.mubr.bf16.gmra.mrb[0].mxu0 %v265
  %v593 = vpop.f32.mrb[0].mxu0
  %v594 = vadd.f32 0.0, %v593
  %v595 = vpop.f32.mrb[0].mxu0
  %v596 = vpop.f32.mrb[0].mxu0
  %v597 = vadd.f32 0.0, %v596
  %v598 = vpop.f32.mrb[0].mxu0
  %599 = vmatprep.mubr.bf16.mxu0 0
  %600 = vmatmul.mubr.bf16.gmra.mrb[0].mxu0 %v266
  %v601 = vpop.f32.mrb[0].mxu0
  %v602 = vadd.f32 0.0, %v601
  %v603 = vpop.f32.mrb[0].mxu0
  %v604 = vpop.f32.mrb[0].mxu0
  %v605 = vadd.f32 0.0, %v604
  %v606 = vpop.f32.mrb[0].mxu0
  %607 = vmatprep.mubr.bf16.mxu0 0
  %608 = vmatmul.mubr.bf16.gmra.mrb[0].mxu0 %v267
  %v609 = vpop.f32.mrb[0].mxu0
  %v610 = vadd.f32 0.0, %v609
  %v611 = vpop.f32.mrb[0].mxu0
  %v612 = vpop.f32.mrb[0].mxu0
  %v613 = vadd.f32 0.0, %v612
  %v614 = vpop.f32.mrb[0].mxu0
  %615 = vmatprep.mubr.bf16.mxu0 0
  %616 = vmatmul.mubr.bf16.gmra.mrb[0].mxu0 %v268
  %v617 = vpop.f32.mrb[0].mxu0
  %v618 = vadd.f32 0.0, %v617
  %v619 = vpop.f32.mrb[0].mxu0
  %v620 = vpop.f32.mrb[0].mxu0
  %v621 = vadd.f32 0.0, %v620
  %v622 = vpop.f32.mrb[0].mxu0
  %623 = vmatprep.mubr.bf16.mxu0 0
  %624 = vmatmul.mubr.bf16.gmra.mrb[0].mxu0 %v269
  %v625 = vpop.f32.mrb[0].mxu0
  %v626 = vadd.f32 0.0, %v625
  %v627 = vpop.f32.mrb[0].mxu0
  %v628 = vpop.f32.mrb[0].mxu0
  %v629 = vadd.f32 0.0, %v628
  %v630 = vpop.f32.mrb[0].mxu0
  %631 = vmatprep.mubr.bf16.mxu0 0
  %632 = vmatmul.mubr.bf16.gmra.mrb[0].mxu0 %v270
  %v633 = vpop.f32.mrb[0].mxu0
  %v634 = vadd.f32 0.0, %v633
  %v635 = vpop.f32.mrb[0].mxu0
  %v636 = vpop.f32.mrb[0].mxu0
  %v637 = vadd.f32 0.0, %v636
  %v638 = vpop.f32.mrb[0].mxu0
  %639 = vdwg.mxu0
  %v640 = vmax.f32 %v386, 0.0
  %v641 = vmax.f32 %v389, 0.0
  %v642 = vmax.f32 %v394, 0.0
  %v643 = vmax.f32 %v397, 0.0
  %v644 = vmax.f32 %v402, 0.0
  %v645 = vmax.f32 %v405, 0.0
  %v646 = vmax.f32 %v410, 0.0
  %v647 = vmax.f32 %v413, 0.0
  %v648 = vmax.f32 %v418, 0.0
  %v649 = vmax.f32 %v421, 0.0
  %v650 = vmax.f32 %v426, 0.0
  %v651 = vmax.f32 %v429, 0.0
  %v652 = vmax.f32 %v434, 0.0
  %v653 = vmax.f32 %v437, 0.0
  %v654 = vmax.f32 %v442, 0.0
  %v655 = vmax.f32 %v445, 0.0
  %v656 = vmax.f32 %v450, 0.0
  %v657 = vmax.f32 %v453, 0.0
  %v658 = vmax.f32 %v458, 0.0
  %v659 = vmax.f32 %v461, 0.0
  %v660 = vmax.f32 %v466, 0.0
  %v661 = vmax.f32 %v469, 0.0
  %v662 = vmax.f32 %v474, 0.0
  %v663 = vmax.f32 %v477, 0.0
  %v664 = vmax.f32 %v482, 0.0
  %v665 = vmax.f32 %v485, 0.0
  %v666 = vmax.f32 %v490, 0.0
  %v667 = vmax.f32 %v493, 0.0
  %v668 = vmax.f32 %v498, 0.0
  %v669 = vmax.f32 %v501, 0.0
  %v670 = vmax.f32 %v506, 0.0
  %v671 = vmax.f32 %v509, 0.0
  %v672 = vmax.f32 %v514, 0.0
  %v673 = vmax.f32 %v517, 0.0
  %v674 = vmax.f32 %v522, 0.0
  %v675 = vmax.f32 %v525, 0.0
  %v676 = vmax.f32 %v530, 0.0
  %v677 = vmax.f32 %v533, 0.0
  %v678 = vmax.f32 %v538, 0.0
  %v679 = vmax.f32 %v541, 0.0
  %v680 = vmax.f32 %v546, 0.0
  %v681 = vmax.f32 %v549, 0.0
  %v682 = vmax.f32 %v554, 0.0
  %v683 = vmax.f32 %v557, 0.0
  %v684 = vmax.f32 %v562, 0.0
  %v685 = vmax.f32 %v565, 0.0
  %v686 = vmax.f32 %v570, 0.0
  %v687 = vmax.f32 %v573, 0.0
  %v688 = vmax.f32 %v578, 0.0
  %v689 = vmax.f32 %v581, 0.0
  %v690 = vmax.f32 %v586, 0.0
  %v691 = vmax.f32 %v589, 0.0
  %v692 = vmax.f32 %v594, 0.0
  %v693 = vmax.f32 %v597, 0.0
  %v694 = vmax.f32 %v602, 0.0
  %v695 = vmax.f32 %v605, 0.0
  %v696 = vmax.f32 %v610, 0.0
  %v697 = vmax.f32 %v613, 0.0
  %v698 = vmax.f32 %v618, 0.0
  %v699 = vmax.f32 %v621, 0.0
  %v700 = vmax.f32 %v626, 0.0
  %v701 = vmax.f32 %v629, 0.0
  %v702 = vmax.f32 %v634, 0.0
  %v703 = vmax.f32 %v637, 0.0
  %v704 = vld [vmem:[%s2] sm:$0xff]
  %v705 = vld [vmem:[%s2 + $0x8] sm:$0xff]
  %v706 = vld [vmem:[%s2 + $0x10] sm:$0xff]
  %v707 = vld [vmem:[%s2 + $0x18] sm:$0xff]
  %708 = vmatprep.subr.mxu0 0.0
  %709 = vmatpush1.msra.mxu0 %v640
  %710 = vmatprep.subr.mxu0 0.0
  %711 = vmatpush1.msra.mxu0 %v641
  %712 = vmatprep.subr.mxu0 0.0
  %713 = vmatpush1.msra.mxu0 %v642
  %714 = vmatprep.subr.mxu0 0.0
  %715 = vmatpush1.msra.mxu0 %v643
  %716 = vmatprep.subr.mxu0 0.0
  %717 = vmatpush1.msra.mxu0 %v644
  %718 = vmatprep.subr.mxu0 0.0
  %719 = vmatpush1.msra.mxu0 %v645
  %720 = vmatprep.subr.mxu0 0.0
  %721 = vmatpush1.msra.mxu0 %v646
  %722 = vmatprep.subr.mxu0 0.0
  %723 = vmatpush1.msra.mxu0 %v647
  %724 = vmatprep.subr.mxu0 0.0
  %725 = vmatpush1.msra.mxu0 %v648
  %726 = vmatprep.subr.mxu0 0.0
  %727 = vmatpush1.msra.mxu0 %v649
  %728 = vmatprep.subr.mxu0 0.0
  %729 = vmatpush1.msra.mxu0 %v650
  %730 = vmatprep.subr.mxu0 0.0
  %731 = vmatpush1.msra.mxu0 %v651
  %732 = vmatprep.subr.mxu0 0.0
  %733 = vmatpush1.msra.mxu0 %v652
  %734 = vmatprep.subr.mxu0 0.0
  %735 = vmatpush1.msra.mxu0 %v653
  %736 = vmatprep.subr.mxu0 0.0
  %737 = vmatpush1.msra.mxu0 %v654
  %738 = vmatprep.subr.mxu0 0.0
  %739 = vmatpush1.msra.mxu0 %v655
  %740 = vmatprep.subr.mxu0 0.0
  %741 = vmatpush1.msra.mxu0 %v656
  %742 = vmatprep.subr.mxu0 0.0
  %743 = vmatpush1.msra.mxu0 %v657
  %744 = vmatprep.subr.mxu0 0.0
  %745 = vmatpush1.msra.mxu0 %v658
  %746 = vmatprep.subr.mxu0 0.0
  %747 = vmatpush1.msra.mxu0 %v659
  %748 = vmatprep.subr.mxu0 0.0
  %749 = vmatpush1.msra.mxu0 %v660
  %750 = vmatprep.subr.mxu0 0.0
  %751 = vmatpush1.msra.mxu0 %v661
  %752 = vmatprep.subr.mxu0 0.0
  %753 = vmatpush1.msra.mxu0 %v662
  %754 = vmatprep.subr.mxu0 0.0
  %755 = vmatpush1.msra.mxu0 %v663
  %756 = vmatprep.subr.mxu0 0.0
  %757 = vmatpush1.msra.mxu0 %v664
  %758 = vmatprep.subr.mxu0 0.0
  %759 = vmatpush1.msra.mxu0 %v665
  %760 = vmatprep.subr.mxu0 0.0
  %761 = vmatpush1.msra.mxu0 %v666
  %762 = vmatprep.subr.mxu0 0.0
  %763 = vmatpush1.msra.mxu0 %v667
  %764 = vmatprep.subr.mxu0 0.0
  %765 = vmatpush1.msra.mxu0 %v668
  %766 = vmatprep.subr.mxu0 0.0
  %767 = vmatpush1.msra.mxu0 %v669
  %768 = vmatprep.subr.mxu0 0.0
  %769 = vmatpush1.msra.mxu0 %v670
  %770 = vmatprep.subr.mxu0 0.0
  %771 = vmatpush1.msra.mxu0 %v671
  %772 = vmatprep.mubr.f32.mxu0 %v705
  %773 = vmatmul.mubr.f32.gmra.mrb[0].mxu0 %v704
  %v774 = vpop.f32.mrb[0].mxu0
  %v775 = vadd.f32 0.0, %v774
  %v776 = vpop.f32.mrb[0].mxu0
  %777 = vdwg.mxu0
  %778 = vmatprep.subr.mxu0 0.0
  %779 = vmatpush1.msra.mxu0 %v672
  %780 = vmatprep.subr.mxu0 0.0
  %781 = vmatpush1.msra.mxu0 %v673
  %782 = vmatprep.subr.mxu0 0.0
  %783 = vmatpush1.msra.mxu0 %v674
  %784 = vmatprep.subr.mxu0 0.0
  %785 = vmatpush1.msra.mxu0 %v675
  %786 = vmatprep.subr.mxu0 0.0
  %787 = vmatpush1.msra.mxu0 %v676
  %788 = vmatprep.subr.mxu0 0.0
  %789 = vmatpush1.msra.mxu0 %v677
  %790 = vmatprep.subr.mxu0 0.0
  %791 = vmatpush1.msra.mxu0 %v678
  %792 = vmatprep.subr.mxu0 0.0
  %793 = vmatpush1.msra.mxu0 %v679
  %794 = vmatprep.subr.mxu0 0.0
  %795 = vmatpush1.msra.mxu0 %v680
  %796 = vmatprep.subr.mxu0 0.0
  %797 = vmatpush1.msra.mxu0 %v681
  %798 = vmatprep.subr.mxu0 0.0
  %799 = vmatpush1.msra.mxu0 %v682
  %800 = vmatprep.subr.mxu0 0.0
  %801 = vmatpush1.msra.mxu0 %v683
  %802 = vmatprep.subr.mxu0 0.0
  %803 = vmatpush1.msra.mxu0 %v684
  %804 = vmatprep.subr.mxu0 0.0
  %805 = vmatpush1.msra.mxu0 %v685
  %806 = vmatprep.subr.mxu0 0.0
  %807 = vmatpush1.msra.mxu0 %v686
  %808 = vmatprep.subr.mxu0 0.0
  %809 = vmatpush1.msra.mxu0 %v687
  %810 = vmatprep.subr.mxu0 0.0
  %811 = vmatpush1.msra.mxu0 %v688
  %812 = vmatprep.subr.mxu0 0.0
  %813 = vmatpush1.msra.mxu0 %v689
  %814 = vmatprep.subr.mxu0 0.0
  %815 = vmatpush1.msra.mxu0 %v690
  %816 = vmatprep.subr.mxu0 0.0
  %817 = vmatpush1.msra.mxu0 %v691
  %818 = vmatprep.subr.mxu0 0.0
  %819 = vmatpush1.msra.mxu0 %v692
  %820 = vmatprep.subr.mxu0 0.0
  %821 = vmatpush1.msra.mxu0 %v693
  %822 = vmatprep.subr.mxu0 0.0
  %823 = vmatpush1.msra.mxu0 %v694
  %824 = vmatprep.subr.mxu0 0.0
  %825 = vmatpush1.msra.mxu0 %v695
  %826 = vmatprep.subr.mxu0 0.0
  %827 = vmatpush1.msra.mxu0 %v696
  %828 = vmatprep.subr.mxu0 0.0
  %829 = vmatpush1.msra.mxu0 %v697
  %830 = vmatprep.subr.mxu0 0.0
  %831 = vmatpush1.msra.mxu0 %v698
  %832 = vmatprep.subr.mxu0 0.0
  %833 = vmatpush1.msra.mxu0 %v699
  %834 = vmatprep.subr.mxu0 0.0
  %835 = vmatpush1.msra.mxu0 %v700
  %836 = vmatprep.subr.mxu0 0.0
  %837 = vmatpush1.msra.mxu0 %v701
  %838 = vmatprep.subr.mxu0 0.0
  %839 = vmatpush1.msra.mxu0 %v702
  %840 = vmatprep.subr.mxu0 0.0
  %841 = vmatpush1.msra.mxu0 %v703
  %842 = vmatprep.mubr.f32.mxu0 %v707
  %843 = vmatmul.mubr.f32.gmra.mrb[0].mxu0 %v706
  %v844 = vpop.f32.mrb[0].mxu0
  %v845 = vadd.f32 %v775, %v844
  %v846 = vpop.f32.mrb[0].mxu0
  %847 = vdwg.mxu0
  %v848 = vpack.c.bf16 %v845, %v845
  %v865 = vunpack.c.l.b16 %v31
  %v866 = vunpack.c.l.b16 %v32
  %v867 = vunpack.c.l.b16 %v33
  %v868 = vunpack.c.l.b16 %v34
  %v869 = vunpack.c.l.b16 %v35
  %v870 = vunpack.c.l.b16 %v36
  %v871 = vunpack.c.l.b16 %v37
  %v872 = vunpack.c.l.b16 %v38
  %v873 = vunpack.c.l.b16 %v39
  %v874 = vunpack.c.l.b16 %v40
  %v875 = vunpack.c.l.b16 %v41
  %v876 = vunpack.c.l.b16 %v42
  %v877 = vunpack.c.l.b16 %v43
  %v878 = vunpack.c.l.b16 %v44
  %v879 = vunpack.c.l.b16 %v45
  %v880 = vunpack.c.l.b16 %v46
  %v881 = vpack.c.b16 %v866, %v865
  %v882 = vpack.c.b16 %v868, %v867
  %v883 = vpack.c.b16 %v870, %v869
  %v884 = vpack.c.b16 %v872, %v871
  %v885 = vpack.c.b16 %v874, %v873
  %v886 = vpack.c.b16 %v876, %v875
  %v887 = vpack.c.b16 %v878, %v877
  %v888 = vpack.c.b16 %v880, %v879
  %897 = vmatprep.subr.bf16.mxu0 0
  %898 = vmatpush1.bf16.msra.mxu0 %v881
  %899 = vmatprep.subr.bf16.mxu0 0
  %900 = vmatpush1.bf16.msra.mxu0 %v882
  %901 = vmatprep.subr.bf16.mxu0 0
  %902 = vmatpush1.bf16.msra.mxu0 %v883
  %903 = vmatprep.subr.bf16.mxu0 0
  %904 = vmatpush1.bf16.msra.mxu0 %v884
  %905 = vmatprep.subr.bf16.mxu0 0
  %906 = vmatpush1.bf16.msra.mxu0 %v885
  %907 = vmatprep.subr.bf16.mxu0 0
  %908 = vmatpush1.bf16.msra.mxu0 %v886
  %909 = vmatprep.subr.bf16.mxu0 0
  %910 = vmatpush1.bf16.msra.mxu0 %v887
  %911 = vmatprep.subr.bf16.mxu0 0
  %912 = vmatpush1.bf16.msra.mxu0 %v888
  %913 = vmatprep.subr.bf16.mxu0 0
  %914 = vmatpush1.bf16.msra.mxu0 0
  %915 = vmatprep.subr.bf16.mxu0 0
  %916 = vmatpush1.bf16.msra.mxu0 0
  %917 = vmatprep.subr.bf16.mxu0 0
  %918 = vmatpush1.bf16.msra.mxu0 0
  %919 = vmatprep.subr.bf16.mxu0 0
  %920 = vmatpush1.bf16.msra.mxu0 0
  %921 = vmatprep.subr.bf16.mxu0 0
  %922 = vmatpush1.bf16.msra.mxu0 0
  %923 = vmatprep.subr.bf16.mxu0 0
  %924 = vmatpush1.bf16.msra.mxu0 0
  %925 = vmatprep.subr.bf16.mxu0 0
  %926 = vmatpush1.bf16.msra.mxu0 0
  %927 = vmatprep.subr.bf16.mxu0 0
  %928 = vmatpush1.bf16.msra.mxu0 0
  %929 = vmatprep.mubr.bf16.mxu0 0
  %930 = vmatmul.mubr.bf16.gmra.mrb[0].mxu0 %v848
  %v931 = vpop.f32.mrb[0].mxu0
  %v932 = vadd.f32 0.0, %v931
  %v933 = vpop.f32.mrb[0].mxu0
  %v934 = vpop.f32.mrb[0].mxu0
  %v935 = vpop.f32.mrb[0].mxu0
  %936 = vdwg.mxu0
  %937 = vst [vmem:[%s3] sm:$0xff] %v932
  // Predicated region
  $region14: #{cnn_fixed_predictor.1} parent=0 // pred_check
    _
  $region15: #{cnn_fixed_predictor.1} parent=0 // pred_check_branch
    %939 = sbr.rel (0) target = $region17
  $region16: #{cnn_fixed_predictor.1} parent=0 // pred_region
    _
  $region17: #{cnn_fixed_predictor.1} parent=0 // pred_fallthru
    _
  // Predicated region
  $region18: #{cnn_fixed_predictor.1} parent=0 // pred_check
    _
  $region19: #{cnn_fixed_predictor.1} parent=0 // pred_check_branch
    %941 = sbr.rel (0) target = $region21
  $region20: #{cnn_fixed_predictor.1} parent=0 // pred_region
    _
  $region21: #{cnn_fixed_predictor.1} parent=0 // pred_fallthru
    _

</llo_original>
